<compile_context>
chip_gen: v7x
topology: tpu7x:2x2x1
jax: 0.10.0
libtpu: 0.0.40
codegen_flags: <defaults>
</compile_context>

<pallas_src>
import jax
import jax.numpy as jnp
from jax.experimental import pallas as pl
from jax.experimental.pallas import tpu as pltpu

_LANES = 128        # lane-dense padded output width (loc|conf live in the first 2+NC lanes)
_SUBLANE = 8        # f32 sublane tile
_SMALL_B_MAX = 64   # padded-batch threshold for the in-kernel-pool fast path


def _round_up(x, m):
    return ((x + m - 1) // m) * m


# --------------------------------------------------------------------------
# Kernels
# --------------------------------------------------------------------------
def _pooled_head_kernel(x_ref, w_ref, b_ref, out_ref):
    # Small-batch fast path.
    #   x_ref:   (Bp, C, L)  activations (original dtype; upcast for the reduce)
    #   w_ref:   (C, 128)    f32 [loc|conf] weights with the 1/L fold, zero-padded lanes
    #   b_ref:   (1, 128)    f32 [loc|conf] bias, zero-padded lanes
    #   out_ref: (Bp, 128)   f32 lane-dense output slab
    pooled = jnp.sum(x_ref[...].astype(jnp.float32), axis=-1)          # (Bp, C)
    out_ref[...] = (
        jnp.dot(pooled, w_ref[...], preferred_element_type=jnp.float32)
        + b_ref[...]
    )


def _fused_matmul_kernel(x_ref, w_ref, b_ref, out_ref):
    # Large-batch path: mean + both heads fused into one bf16 MXU matmul.
    #   x_ref:   (TB, C*L)   activations; cast to bf16 (no-op if already bf16)
    #   w_ref:   (C*L, 128)  bf16 fused weights (1/L fold replicated over L), zero-padded lanes
    #   b_ref:   (1, 128)    f32 fused bias
    #   out_ref: (TB, 128)   f32 lane-dense output slab
    out_ref[...] = (
        jnp.dot(x_ref[...].astype(jnp.bfloat16), w_ref[...],
                preferred_element_type=jnp.float32)
        + b_ref[...]
    )


# --------------------------------------------------------------------------
# Parameter prep (pure functions of the Linear weights -- cacheable by callers)
# --------------------------------------------------------------------------
def _fused_head_params(wl, bl, wc, bc, L):
    """Concatenate [loc|conf] heads and fold the 1/L AvgPool mean into the weights."""
    w_cat = jnp.concatenate([wl, wc], axis=1).astype(jnp.float32) / L   # (C, 2+NC)
    b_cat = jnp.concatenate([bl, bc]).astype(jnp.float32)               # (2+NC,)
    return w_cat, b_cat


def _pad_lanes(w, b):
    """Zero-pad (C, n_out)/(n_out,) to lane-dense (C, 128)/(1, 128)."""
    C, n_out = w.shape
    wp = jnp.zeros((C, _LANES), w.dtype).at[:, :n_out].set(w)
    bp = jnp.zeros((1, _LANES), jnp.float32).at[0, :n_out].set(b)
    return wp, bp


# --------------------------------------------------------------------------
# Forward
# --------------------------------------------------------------------------
def multi_detector_forward(x_ncdhw, wl, bl, wc, bc, start_boundaries=None,
                           pool_kernel=(16, 2, 2)):
    """MultiDetector(extra_layers=False, phase='train').forward.

    x_ncdhw: (B, C, D, H, W), f32 or bf16 (bf16 halves HBM traffic on the hot path).
    wl: (C, 2), bl: (2,), wc: (C, num_classes), bc: (num_classes,)
       (nn.Linear weights already transposed to (in, out)).
    Returns (loc, conf) with shapes (B, 2) and (B, num_classes).
    start_boundaries is accepted for API parity but unused in the 'train' phase.
    """
    B, C, D, H, W = x_ncdhw.shape
    # Exactness of the 1/L fold requires a single pooling window over the whole
    # extent (kernel_size == spatial extent, default stride=1 / padding=0).
    assert (D, H, W) == tuple(pool_kernel), (
        "spatial extent must equal AvgPool3d kernel_size for this kernel")
    L = D * H * W
    K = C * L
    num_classes = wc.shape[1]
    n_out = 2 + num_classes
    assert n_out <= _LANES

    w_cat, b_cat = _fused_head_params(wl, bl, wc, bc, L)

    # Pad the batch only to the 8-row sublane tile (full (8,128) tiles, no
    # masked partial loads/stores) -- never up to a whole batch-block multiple.
    Bp8 = _round_up(max(B, 1), _SUBLANE)

    if Bp8 <= _SMALL_B_MAX:
        # -------- small-batch fast path (production B=2) --------
        # In-kernel pool + tiny matmul; total weight traffic is 16 KB, not 1 MiB.
        x3 = x_ncdhw.reshape(B, C, L)
        if Bp8 != B:
            x3 = jnp.concatenate(
                [x3, jnp.zeros((Bp8 - B, C, L), x3.dtype)], axis=0)
        w_pad, b_pad = _pad_lanes(w_cat, b_cat)          # f32: precision is cheap here

        out = pl.pallas_call(
            _pooled_head_kernel,
            out_shape=jax.ShapeDtypeStruct((Bp8, _LANES), jnp.float32),
            grid=(1,),
            in_specs=[
                pl.BlockSpec((Bp8, C, L), lambda i: (0, 0, 0)),   # activations
                pl.BlockSpec((C, _LANES), lambda i: (0, 0)),      # fused weights (16 KB)
                pl.BlockSpec((1, _LANES), lambda i: (0, 0)),      # fused bias
            ],
            out_specs=pl.BlockSpec((Bp8, _LANES), lambda i: (0, 0)),
        )(x3, w_pad, b_pad)
    else:
        # -------- large-batch path: fused replicated-weight bf16 MXU matmul --------
        # W_full[c*L + l, :] = [wl|wc][c, :] / L, cast to bf16 AFTER the fold.
        w_full = jnp.broadcast_to(w_cat[:, None, :], (C, L, n_out)).reshape(K, n_out)
        w_pad, b_pad = _pad_lanes(w_full.astype(jnp.bfloat16), b_cat)
        x_flat = x_ncdhw.reshape(B, K)                   # keep caller dtype (bf16 ideal)

        # Generation-aware batch tile:
        #  * double-buffered x tiles budgeted at ~8 MiB so they fit v5e's 16 MiB
        #    default scoped VMEM: cap = 512 rows f32 / 1024 rows bf16 at K=2048
        #    (raise via vmem_limit_bytes on v6e/v7x if desired);
        #  * force >= 2 grid blocks when there is enough work so both v7x TCs run.
        itemsize = x_flat.dtype.itemsize
        cap = (8 * 1024 * 1024) // (2 * K * itemsize)
        cap = max(_SUBLANE, min(2048, (cap // _SUBLANE) * _SUBLANE))
        n_blocks = pl.cdiv(Bp8, cap)
        if Bp8 >= 2 * _SUBLANE:
            n_blocks = max(n_blocks, 2)
        TB = _round_up(pl.cdiv(Bp8, n_blocks), _SUBLANE)
        n_blocks = pl.cdiv(Bp8, TB)
        Bp = n_blocks * TB                               # residual pad <= a few rows/block
        if Bp != B:
            x_flat = jnp.concatenate(
                [x_flat, jnp.zeros((Bp - B, K), x_flat.dtype)], axis=0)

        out = pl.pallas_call(
            _fused_matmul_kernel,
            out_shape=jax.ShapeDtypeStruct((Bp, _LANES), jnp.float32),
            grid=(n_blocks,),
            in_specs=[
                pl.BlockSpec((TB, K), lambda i: (i, 0)),          # activations, batch-tiled
                pl.BlockSpec((K, _LANES), lambda i: (0, 0)),      # fused bf16 weights (resident)
                pl.BlockSpec((1, _LANES), lambda i: (0, 0)),      # fused bias (resident)
            ],
            out_specs=pl.BlockSpec((TB, _LANES), lambda i: (i, 0)),
            compiler_params=pltpu.CompilerParams(
                dimension_semantics=("parallel",)),
        )(x_flat, w_pad, b_pad)

    loc = out[:B, :2]
    conf = out[:B, 2:2 + num_classes]
    return loc, conf


def _reference_forward(x_ncdhw, wl, bl, wc, bc):
    B = x_ncdhw.shape[0]
    pooled = jnp.mean(x_ncdhw.astype(jnp.float32), axis=(2, 3, 4)).reshape(B, -1)
    return pooled @ wl + bl, pooled @ wc + bc


if __name__ == "__main__":
    # Shapes consistent with the module:
    #   kernel_size=(16,2,2) => sample_duration=16, spatial (D,H,W)=(16,2,2)
    #   in_channel = in_planes * block.expansion = 32, num_classes = 3
    B, C, D, H, W = 2, 32, 16, 2, 2
    num_classes = 3

    key = jax.random.PRNGKey(0)
    kx, kwl, kbl, kwc, kbc, kx2 = jax.random.split(key, 6)

    x = jax.random.normal(kx, (B, C, D, H, W), dtype=jnp.float32)
    # nn.Linear weight is (out, in); kept here in transposed (in, out) form.
    wl = jax.random.normal(kwl, (C, 2), dtype=jnp.float32) * 0.05
    bl = jax.random.normal(kbl, (2,), dtype=jnp.float32) * 0.05
    wc = jax.random.normal(kwc, (C, num_classes), dtype=jnp.float32) * 0.05
    bc = jax.random.normal(kbc, (num_classes,), dtype=jnp.float32) * 0.05
    start_boundaries = jnp.zeros((B,), dtype=jnp.float32)   # unused in 'train' phase

    # --- production shape (B=2): small-batch in-kernel-pool fast path, f32 ---
    loc, conf = multi_detector_forward(x, wl, bl, wc, bc, start_boundaries)
    jax.block_until_ready((loc, conf))
    ref_loc, ref_conf = _reference_forward(x, wl, bl, wc, bc)
    assert loc.shape == (B, 2) and conf.shape == (B, num_classes)
    assert jnp.allclose(loc, ref_loc, atol=1e-4, rtol=1e-4)
    assert jnp.allclose(conf, ref_conf, atol=1e-4, rtol=1e-4)

    # --- same path with a bf16 activation stream (typical backbone output dtype) ---
    loc_h, conf_h = multi_detector_forward(
        x.astype(jnp.bfloat16), wl, bl, wc, bc, start_boundaries)
    jax.block_until_ready((loc_h, conf_h))
    assert jnp.allclose(loc_h, ref_loc, atol=2e-3, rtol=2e-2)
    assert jnp.allclose(conf_h, ref_conf, atol=2e-3, rtol=2e-2)

    # --- larger batch: tiled replicated-weight bf16 MXU path ---
    B2 = 80
    x2 = jax.random.normal(kx2, (B2, C, D, H, W), dtype=jnp.float32)
    loc2, conf2 = multi_detector_forward(
        x2, wl, bl, wc, bc, jnp.zeros((B2,), jnp.float32))
    jax.block_until_ready((loc2, conf2))
    ref_loc2, ref_conf2 = _reference_forward(x2, wl, bl, wc, bc)
    assert loc2.shape == (B2, 2) and conf2.shape == (B2, num_classes)
    assert jnp.allclose(loc2, ref_loc2, atol=3e-3, rtol=3e-2)
    assert jnp.allclose(conf2, ref_conf2, atol=3e-3, rtol=3e-2)

    # TODO(synk): extra_layers=True / phase='test' branches (Conv3d pyramids,
    # decoding/detection post-processing) depend on an external `Configure`
    # class and data-dependent control flow; not implemented here.
    print("KERNEL_OK")
</pallas_src>

<mosaic_0001>
module attributes {stable_mosaic.version = 11 : i64} {
  func.func @_pooled_head_kernel(%arg0: i32, %arg1: memref<8x32x64xf32, #tpu.memory_space<vmem>>, %arg2: memref<32x128xf32, #tpu.memory_space<vmem>>, %arg3: memref<1x128xf32, #tpu.memory_space<vmem>>, %arg4: memref<8x128xf32, #tpu.memory_space<vmem>>) attributes {dimension_semantics = [#tpu.dimension_semantics<arbitrary>], iteration_bounds = array<i64: 1>, scalar_prefetch = 0 : i64, scratch_operands = 0 : i64, tpu.core_type = #tpu.core_type<tc>, window_params = [{pipeline_mode = #tpu.pipeline_mode<synchronous>, transform_indices = @transform_0, window_bounds = array<i64: 8, 32, 64>}, {pipeline_mode = #tpu.pipeline_mode<synchronous>, transform_indices = @transform_1, window_bounds = array<i64: 32, 128>}, {pipeline_mode = #tpu.pipeline_mode<synchronous>, transform_indices = @transform_2, window_bounds = array<i64: 1, 128>}, {pipeline_mode = #tpu.pipeline_mode<synchronous>, transform_indices = @transform_3, window_bounds = array<i64: 8, 128>}]} {
    %c0 = arith.constant 0 : index
    %c0_0 = arith.constant 0 : index
    %c0_1 = arith.constant 0 : index
    %0 = vector.load %arg1[%c0, %c0_0, %c0_1] : memref<8x32x64xf32, #tpu.memory_space<vmem>>, vector<8x32x64xf32>
    %cst = arith.constant dense<0.000000e+00> : vector<8x32xf32>
    %1 = vector.multi_reduction <add>, %0, %cst [2] : vector<8x32x64xf32> to vector<8x32xf32>
    %c0_2 = arith.constant 0 : index
    %c0_3 = arith.constant 0 : index
    %2 = vector.load %arg2[%c0_2, %c0_3] : memref<32x128xf32, #tpu.memory_space<vmem>>, vector<32x128xf32>
    %cst_4 = arith.constant dense<0.000000e+00> : vector<8x128xf32>
    %3 = tpu.matmul %1, %2, %cst_4 {dimension_numbers = #tpu.dot_dimension_numbers<[1], [0], [0], [1], [0, 0, 1, 1], [], []>} : vector<8x32xf32>, vector<32x128xf32>, vector<8x128xf32> -> vector<8x128xf32>
    %c0_5 = arith.constant 0 : index
    %c0_6 = arith.constant 0 : index
    %4 = vector.load %arg3[%c0_5, %c0_6] : memref<1x128xf32, #tpu.memory_space<vmem>>, vector<1x128xf32>
    %5 = vector.broadcast %4 : vector<1x128xf32> to vector<8x128xf32>
    %6 = arith.addf %3, %5 : vector<8x128xf32>
    %c0_7 = arith.constant 0 : index
    %c0_8 = arith.constant 0 : index
    %7 = vector.load %arg4[%c0_7, %c0_8] : memref<8x128xf32, #tpu.memory_space<vmem>>, vector<8x128xf32>
    tpu.vector_store %arg4[%c0_7, %c0_8], %6 {strides = array<i32>} : memref<8x128xf32, #tpu.memory_space<vmem>>, vector<8x128xf32>,
    return
  }
  func.func @transform_0(%arg0: i32) -> (i32, i32, i32) {
    %c0_i32 = arith.constant 0 : i32
    %c0_i32_0 = arith.constant 0 : i32
    %c0_i32_1 = arith.constant 0 : i32
    %c0_i32_2 = arith.constant 0 : i32
    return %c0_i32, %c0_i32_0, %c0_i32_1 : i32, i32, i32
  }
  func.func @transform_1(%arg0: i32) -> (i32, i32) {
    %c0_i32 = arith.constant 0 : i32
    %c0_i32_0 = arith.constant 0 : i32
    %c0_i32_1 = arith.constant 0 : i32
    return %c0_i32, %c0_i32_0 : i32, i32
  }
  func.func @transform_2(%arg0: i32) -> (i32, i32) {
    %c0_i32 = arith.constant 0 : i32
    %c0_i32_0 = arith.constant 0 : i32
    %c0_i32_1 = arith.constant 0 : i32
    return %c0_i32, %c0_i32_0 : i32, i32
  }
  func.func @transform_3(%arg0: i32) -> (i32, i32) {
    %c0_i32 = arith.constant 0 : i32
    %c0_i32_0 = arith.constant 0 : i32
    %c0_i32_1 = arith.constant 0 : i32
    return %c0_i32, %c0_i32_0 : i32, i32
  }
}

</mosaic_0001>

<llo_original>
// kernel: tpu_custom_call.1
$region0: #{tpu_custom_call.1}
  #allocation0 [shape = 'u32[]', space=smem, size = 0x4, offset = 0x4, fixed_abs, tag = 'smem constant byte address 0x4 - core index']
  #allocation1 [shape = 'u32[144,128]{1,0:T(1,128)}', space=vmem, size = 0x12000, scoped, tag = 'internal scratch']
  %s0 = inlined_call_operand.hbm [shape: f32[8,32,64], index: 0, kind: input, shape index: {}]
  %s1 = inlined_call_operand.hbm [shape: f32[32,128], index: 1, kind: input, shape index: {}]
  %s2 = inlined_call_operand.vmem [shape: f32[1,128], index: 2, kind: input, shape index: {}]
  %s3 = inlined_call_operand.hbm [shape: f32[8,128], index: 3, kind: output, shape index: {}]
  %s4 = sld [smem:[#allocation0]]
  $region30: #{tpu_custom_call.1} parent=0
    _
  %s6 = ssub.s32 1, %s4
  %s7 = scalar_select 0, %s6, %s4
  $region1: #{tpu_custom_call.1} parent=0
    #allocation2 [shape = 'u8[131072]{0}', space=vmem, size = 0x20000, scoped, tag = 'input window, operand 0, single buffered']
    #allocation3 [shape = 's32[1]{0}', space=sflag, size = 0x4, scoped, tag = 'scoped memory for tpu_custom_call.1']
    #allocation4 [shape = 's32[1]{0}', space=sflag, size = 0x4, scoped, tag = 'scoped memory for tpu_custom_call.1']
    #allocation5 [shape = 'u8[16384]{0}', space=vmem, size = 0x4000, scoped, tag = 'input window, operand 1, single buffered']
    #allocation6 [shape = 's32[1]{0}', space=sflag, size = 0x4, scoped, tag = 'scoped memory for tpu_custom_call.1']
    #allocation7 [shape = 'u8[4096]{0}', space=vmem, size = 0x1000, scoped, tag = 'output window, operand 0, single buffered']
    %8 = vsyncpa [#allocation3], 0
    %9 = vsyncpa [#allocation6], 0
    %10 = vsyncpa [#allocation4], 0
    // Predicated region
    $region2: #{tpu_custom_call.1} parent=1 // pred_check
      _
    $region3: #{tpu_custom_call.1} parent=1 // pred_check_branch
      %12 = sbr.rel (0) target = $region5
    $region4: #{tpu_custom_call.1} parent=1 // pred_region
      %s14 = ssub.s32 4096, 4096
      %15 = vsyncadd [#allocation3], %s14
      %s16 = sshll.u32 [#allocation2], 4
      %s17 = int_to_ptr.vmem [resolvable:$true] %s16
      %22 = dma.hbm_to_vmem [thread:$0]  %s0, 4096, %s17, [#allocation3], 128, 128, 8
    $region5: #{tpu_custom_call.1} parent=1 // pred_fallthru
      _
    // Predicated region
    $region6: #{tpu_custom_call.1} parent=1 // pred_check
      _
    $region7: #{tpu_custom_call.1} parent=1 // pred_check_branch
      %24 = sbr.rel (0) target = $region9
    $region8: #{tpu_custom_call.1} parent=1 // pred_region
      %s26 = ssub.s32 512, 512
      %27 = vsyncadd [#allocation6], %s26
      %s28 = sshll.u32 [#allocation5], 4
      %s29 = int_to_ptr.vmem [resolvable:$true] %s28
      %34 = dma.hbm_to_vmem [thread:$0]  %s1, 512, %s29, [#allocation6], 128, 128, 8
    $region9: #{tpu_custom_call.1} parent=1 // pred_fallthru
      _
    // Predicated region
    $region10: #{tpu_custom_call.1} parent=1 // pred_check
      _
    $region11: #{tpu_custom_call.1} parent=1 // pred_check_branch
      %36 = sbr.rel (0) target = $region13
    $region12: #{tpu_custom_call.1} parent=1 // pred_region
      _
    $region13: #{tpu_custom_call.1} parent=1 // pred_fallthru
      _
    // Predicated region
    $region14: #{tpu_custom_call.1} parent=1 // pred_check
      _
    $region15: #{tpu_custom_call.1} parent=1 // pred_check_branch
      %38 = sbr.rel (0) target = $region17
    $region16: #{tpu_custom_call.1} parent=1 // pred_region
      %39 = dma.done [#allocation3], 4096
    $region17: #{tpu_custom_call.1} parent=1 // pred_fallthru
      _
    // Predicated region
    $region18: #{tpu_custom_call.1} parent=1 // pred_check
      _
    $region19: #{tpu_custom_call.1} parent=1 // pred_check_branch
      %41 = sbr.rel (0) target = $region21
    $region20: #{tpu_custom_call.1} parent=1 // pred_region
      %42 = dma.done [#allocation6], 512
    $region21: #{tpu_custom_call.1} parent=1 // pred_fallthru
      _
    %v43 = vld [vmem:[#allocation2] sm:$0xff]
    %v44 = vld [vmem:[#allocation2 + $0x8] sm:$0xff]
    %v45 = vld [vmem:[#allocation2 + $0x10] sm:$0xff]
    %v46 = vld [vmem:[#allocation2 + $0x18] sm:$0xff]
    %v47 = vld [vmem:[#allocation2 + $0x20] sm:$0xff]
    %v48 = vld [vmem:[#allocation2 + $0x28] sm:$0xff]
    %v49 = vld [vmem:[#allocation2 + $0x30] sm:$0xff]
    %v50 = vld [vmem:[#allocation2 + $0x38] sm:$0xff]
    %v51 = vld [vmem:[#allocation2 + $0x40] sm:$0xff]
    %v52 = vld [vmem:[#allocation2 + $0x48] sm:$0xff]
    %v53 = vld [vmem:[#allocation2 + $0x50] sm:$0xff]
    %v54 = vld [vmem:[#allocation2 + $0x58] sm:$0xff]
    %v55 = vld [vmem:[#allocation2 + $0x60] sm:$0xff]
    %v56 = vld [vmem:[#allocation2 + $0x68] sm:$0xff]
    %v57 = vld [vmem:[#allocation2 + $0x70] sm:$0xff]
    %v58 = vld [vmem:[#allocation2 + $0x78] sm:$0xff]
    %v59 = vld [vmem:[#allocation2 + $0x80] sm:$0xff]
    %v60 = vld [vmem:[#allocation2 + $0x88] sm:$0xff]
    %v61 = vld [vmem:[#allocation2 + $0x90] sm:$0xff]
    %v62 = vld [vmem:[#allocation2 + $0x98] sm:$0xff]
    %v63 = vld [vmem:[#allocation2 + $0xa0] sm:$0xff]
    %v64 = vld [vmem:[#allocation2 + $0xa8] sm:$0xff]
    %v65 = vld [vmem:[#allocation2 + $0xb0] sm:$0xff]
    %v66 = vld [vmem:[#allocation2 + $0xb8] sm:$0xff]
    %v67 = vld [vmem:[#allocation2 + $0xc0] sm:$0xff]
    %v68 = vld [vmem:[#allocation2 + $0xc8] sm:$0xff]
    %v69 = vld [vmem:[#allocation2 + $0xd0] sm:$0xff]
    %v70 = vld [vmem:[#allocation2 + $0xd8] sm:$0xff]
    %v71 = vld [vmem:[#allocation2 + $0xe0] sm:$0xff]
    %v72 = vld [vmem:[#allocation2 + $0xe8] sm:$0xff]
    %v73 = vld [vmem:[#allocation2 + $0xf0] sm:$0xff]
    %v74 = vld [vmem:[#allocation2 + $0xf8] sm:$0xff]
    %vm75 = vcmask 523264
    %v76 = vsel %vm75, %v43, 0.0
    %77 = vadd.xlane.f32.xlu0 %v76
    %v78 = vpop.xlane.xlu0 %77
    %v79 = vsel %vm75, %v44, 0.0
    %80 = vadd.xlane.f32.xlu0 %v79
    %v81 = vpop.xlane.xlu0 %80
    %v82 = vsel %vm75, %v45, 0.0
    %83 = vadd.xlane.f32.xlu0 %v82
    %v84 = vpop.xlane.xlu0 %83
    %v85 = vsel %vm75, %v46, 0.0
    %86 = vadd.xlane.f32.xlu0 %v85
    %v87 = vpop.xlane.xlu0 %86
    %v88 = vsel %vm75, %v47, 0.0
    %89 = vadd.xlane.f32.xlu0 %v88
    %v90 = vpop.xlane.xlu0 %89
    %v91 = vsel %vm75, %v48, 0.0
    %92 = vadd.xlane.f32.xlu0 %v91
    %v93 = vpop.xlane.xlu0 %92
    %v94 = vsel %vm75, %v49, 0.0
    %95 = vadd.xlane.f32.xlu0 %v94
    %v96 = vpop.xlane.xlu0 %95
    %v97 = vsel %vm75, %v50, 0.0
    %98 = vadd.xlane.f32.xlu0 %v97
    %v99 = vpop.xlane.xlu0 %98
    %v100 = vsel %vm75, %v51, 0.0
    %101 = vadd.xlane.f32.xlu0 %v100
    %v102 = vpop.xlane.xlu0 %101
    %v103 = vsel %vm75, %v52, 0.0
    %104 = vadd.xlane.f32.xlu0 %v103
    %v105 = vpop.xlane.xlu0 %104
    %v106 = vsel %vm75, %v53, 0.0
    %107 = vadd.xlane.f32.xlu0 %v106
    %v108 = vpop.xlane.xlu0 %107
    %v109 = vsel %vm75, %v54, 0.0
    %110 = vadd.xlane.f32.xlu0 %v109
    %v111 = vpop.xlane.xlu0 %110
    %v112 = vsel %vm75, %v55, 0.0
    %113 = vadd.xlane.f32.xlu0 %v112
    %v114 = vpop.xlane.xlu0 %113
    %v115 = vsel %vm75, %v56, 0.0
    %116 = vadd.xlane.f32.xlu0 %v115
    %v117 = vpop.xlane.xlu0 %116
    %v118 = vsel %vm75, %v57, 0.0
    %119 = vadd.xlane.f32.xlu0 %v118
    %v120 = vpop.xlane.xlu0 %119
    %v121 = vsel %vm75, %v58, 0.0
    %122 = vadd.xlane.f32.xlu0 %v121
    %v123 = vpop.xlane.xlu0 %122
    %v124 = vsel %vm75, %v59, 0.0
    %125 = vadd.xlane.f32.xlu0 %v124
    %v126 = vpop.xlane.xlu0 %125
    %v127 = vsel %vm75, %v60, 0.0
    %128 = vadd.xlane.f32.xlu0 %v127
    %v129 = vpop.xlane.xlu0 %128
    %v130 = vsel %vm75, %v61, 0.0
    %131 = vadd.xlane.f32.xlu0 %v130
    %v132 = vpop.xlane.xlu0 %131
    %v133 = vsel %vm75, %v62, 0.0
    %134 = vadd.xlane.f32.xlu0 %v133
    %v135 = vpop.xlane.xlu0 %134
    %v136 = vsel %vm75, %v63, 0.0
    %137 = vadd.xlane.f32.xlu0 %v136
    %v138 = vpop.xlane.xlu0 %137
    %v139 = vsel %vm75, %v64, 0.0
    %140 = vadd.xlane.f32.xlu0 %v139
    %v141 = vpop.xlane.xlu0 %140
    %v142 = vsel %vm75, %v65, 0.0
    %143 = vadd.xlane.f32.xlu0 %v142
    %v144 = vpop.xlane.xlu0 %143
    %v145 = vsel %vm75, %v66, 0.0
    %146 = vadd.xlane.f32.xlu0 %v145
    %v147 = vpop.xlane.xlu0 %146
    %v148 = vsel %vm75, %v67, 0.0
    %149 = vadd.xlane.f32.xlu0 %v148
    %v150 = vpop.xlane.xlu0 %149
    %v151 = vsel %vm75, %v68, 0.0
    %152 = vadd.xlane.f32.xlu0 %v151
    %v153 = vpop.xlane.xlu0 %152
    %v154 = vsel %vm75, %v69, 0.0
    %155 = vadd.xlane.f32.xlu0 %v154
    %v156 = vpop.xlane.xlu0 %155
    %v157 = vsel %vm75, %v70, 0.0
    %158 = vadd.xlane.f32.xlu0 %v157
    %v159 = vpop.xlane.xlu0 %158
    %v160 = vsel %vm75, %v71, 0.0
    %161 = vadd.xlane.f32.xlu0 %v160
    %v162 = vpop.xlane.xlu0 %161
    %v163 = vsel %vm75, %v72, 0.0
    %164 = vadd.xlane.f32.xlu0 %v163
    %v165 = vpop.xlane.xlu0 %164
    %v166 = vsel %vm75, %v73, 0.0
    %167 = vadd.xlane.f32.xlu0 %v166
    %v168 = vpop.xlane.xlu0 %167
    %v169 = vsel %vm75, %v74, 0.0
    %170 = vadd.xlane.f32.xlu0 %v169
    %v171 = vpop.xlane.xlu0 %170
    %v172 = vld [vmem:[#allocation5] sm:$0xff]
    %v173 = vld [vmem:[#allocation5 + $0x8] sm:$0xff]
    %v174 = vld [vmem:[#allocation5 + $0x10] sm:$0xff]
    %v175 = vld [vmem:[#allocation5 + $0x18] sm:$0xff]
    %v176 = vld [vmem:[%s2] sm:$0x1]
    %v178 = vlaneseq
    %v179 = vshrl.u32 %v178, 7
    %v180 = vsub.s32 0, %v179
    %v181 = vrot.slane %v176, %v180
    %v215 = vlaneseq
    %v216 = vand.u32 %v215, 127
    %v217 = vlaneseq
    %v218 = vshrl.u32 %v217, 7
    %v219 = vsub.s32 %v216, %v218
    %v220 = vrot.slane %v78, %v219
    %v221 = vadd.s32 %v216, 4294967288
    %v222 = vlaneseq
    %v223 = vshrl.u32 %v222, 7
    %v224 = vsub.s32 %v221, %v223
    %v225 = vrot.slane %v81, %v224
    %vm226 = vcmask 130112
    %v227 = vsel %vm226, %v225, %v220
    %v228 = vadd.s32 %v216, 4294967280
    %v229 = vlaneseq
    %v230 = vshrl.u32 %v229, 7
    %v231 = vsub.s32 %v228, %v230
    %v232 = vrot.slane %v84, %v231
    %vm233 = vcmask 195712
    %v234 = vsel %vm233, %v232, %v227
    %v235 = vadd.s32 %v216, 4294967272
    %v236 = vlaneseq
    %v237 = vshrl.u32 %v236, 7
    %v238 = vsub.s32 %v235, %v237
    %v239 = vrot.slane %v87, %v238
    %vm240 = vcmask 261312
    %v241 = vsel %vm240, %v239, %v234
    %v242 = vlaneseq
    %v243 = vshrl.u32 %v242, 7
    %v244 = vsub.s32 %v216, %v243
    %v245 = vrot.slane %v90, %v244
    %v246 = vlaneseq
    %v247 = vshrl.u32 %v246, 7
    %v248 = vsub.s32 %v221, %v247
    %v249 = vrot.slane %v93, %v248
    %v250 = vsel %vm226, %v249, %v245
    %v251 = vlaneseq
    %v252 = vshrl.u32 %v251, 7
    %v253 = vsub.s32 %v228, %v252
    %v254 = vrot.slane %v96, %v253
    %v255 = vsel %vm233, %v254, %v250
    %v256 = vlaneseq
    %v257 = vshrl.u32 %v256, 7
    %v258 = vsub.s32 %v235, %v257
    %v259 = vrot.slane %v99, %v258
    %v260 = vsel %vm240, %v259, %v255
    %v261 = vlaneseq
    %v262 = vshrl.u32 %v261, 7
    %v263 = vsub.s32 %v216, %v262
    %v264 = vrot.slane %v102, %v263
    %v265 = vlaneseq
    %v266 = vshrl.u32 %v265, 7
    %v267 = vsub.s32 %v221, %v266
    %v268 = vrot.slane %v105, %v267
    %v269 = vsel %vm226, %v268, %v264
    %v270 = vlaneseq
    %v271 = vshrl.u32 %v270, 7
    %v272 = vsub.s32 %v228, %v271
    %v273 = vrot.slane %v108, %v272
    %v274 = vsel %vm233, %v273, %v269
    %v275 = vlaneseq
    %v276 = vshrl.u32 %v275, 7
    %v277 = vsub.s32 %v235, %v276
    %v278 = vrot.slane %v111, %v277
    %v279 = vsel %vm240, %v278, %v274
    %v280 = vlaneseq
    %v281 = vshrl.u32 %v280, 7
    %v282 = vsub.s32 %v216, %v281
    %v283 = vrot.slane %v114, %v282
    %v284 = vlaneseq
    %v285 = vshrl.u32 %v284, 7
    %v286 = vsub.s32 %v221, %v285
    %v287 = vrot.slane %v117, %v286
    %v288 = vsel %vm226, %v287, %v283
    %v289 = vlaneseq
    %v290 = vshrl.u32 %v289, 7
    %v291 = vsub.s32 %v228, %v290
    %v292 = vrot.slane %v120, %v291
    %v293 = vsel %vm233, %v292, %v288
    %v294 = vlaneseq
    %v295 = vshrl.u32 %v294, 7
    %v296 = vsub.s32 %v235, %v295
    %v297 = vrot.slane %v123, %v296
    %v298 = vsel %vm240, %v297, %v293
    %v299 = vlaneseq
    %v300 = vshrl.u32 %v299, 7
    %v301 = vsub.s32 %v216, %v300
    %v302 = vrot.slane %v126, %v301
    %v303 = vlaneseq
    %v304 = vshrl.u32 %v303, 7
    %v305 = vsub.s32 %v221, %v304
    %v306 = vrot.slane %v129, %v305
    %v307 = vsel %vm226, %v306, %v302
    %v308 = vlaneseq
    %v309 = vshrl.u32 %v308, 7
    %v310 = vsub.s32 %v228, %v309
    %v311 = vrot.slane %v132, %v310
    %v312 = vsel %vm233, %v311, %v307
    %v313 = vlaneseq
    %v314 = vshrl.u32 %v313, 7
    %v315 = vsub.s32 %v235, %v314
    %v316 = vrot.slane %v135, %v315
    %v317 = vsel %vm240, %v316, %v312
    %v318 = vlaneseq
    %v319 = vshrl.u32 %v318, 7
    %v320 = vsub.s32 %v216, %v319
    %v321 = vrot.slane %v138, %v320
    %v322 = vlaneseq
    %v323 = vshrl.u32 %v322, 7
    %v324 = vsub.s32 %v221, %v323
    %v325 = vrot.slane %v141, %v324
    %v326 = vsel %vm226, %v325, %v321
    %v327 = vlaneseq
    %v328 = vshrl.u32 %v327, 7
    %v329 = vsub.s32 %v228, %v328
    %v330 = vrot.slane %v144, %v329
    %v331 = vsel %vm233, %v330, %v326
    %v332 = vlaneseq
    %v333 = vshrl.u32 %v332, 7
    %v334 = vsub.s32 %v235, %v333
    %v335 = vrot.slane %v147, %v334
    %v336 = vsel %vm240, %v335, %v331
    %v337 = vlaneseq
    %v338 = vshrl.u32 %v337, 7
    %v339 = vsub.s32 %v216, %v338
    %v340 = vrot.slane %v150, %v339
    %v341 = vlaneseq
    %v342 = vshrl.u32 %v341, 7
    %v343 = vsub.s32 %v221, %v342
    %v344 = vrot.slane %v153, %v343
    %v345 = vsel %vm226, %v344, %v340
    %v346 = vlaneseq
    %v347 = vshrl.u32 %v346, 7
    %v348 = vsub.s32 %v228, %v347
    %v349 = vrot.slane %v156, %v348
    %v350 = vsel %vm233, %v349, %v345
    %v351 = vlaneseq
    %v352 = vshrl.u32 %v351, 7
    %v353 = vsub.s32 %v235, %v352
    %v354 = vrot.slane %v159, %v353
    %v355 = vsel %vm240, %v354, %v350
    %v356 = vlaneseq
    %v357 = vshrl.u32 %v356, 7
    %v358 = vsub.s32 %v216, %v357
    %v359 = vrot.slane %v162, %v358
    %v360 = vlaneseq
    %v361 = vshrl.u32 %v360, 7
    %v362 = vsub.s32 %v221, %v361
    %v363 = vrot.slane %v165, %v362
    %v364 = vsel %vm226, %v363, %v359
    %v365 = vlaneseq
    %v366 = vshrl.u32 %v365, 7
    %v367 = vsub.s32 %v228, %v366
    %v368 = vrot.slane %v168, %v367
    %v369 = vsel %vm233, %v368, %v364
    %v370 = vlaneseq
    %v371 = vshrl.u32 %v370, 7
    %v372 = vsub.s32 %v235, %v371
    %v373 = vrot.slane %v171, %v372
    %v374 = vsel %vm240, %v373, %v369
    %vm375 = vcmask 1041409
    %v376 = vsel %vm375, %v260, %v241
    %vm377 = vcmask 1042434
    %v378 = vsel %vm377, %v279, %v376
    %vm379 = vcmask 1043459
    %v380 = vsel %vm379, %v298, %v378
    %vm381 = vcmask 1044484
    %v382 = vsel %vm381, %v317, %v380
    %vm383 = vcmask 1045509
    %v384 = vsel %vm383, %v336, %v382
    %vm385 = vcmask 1046534
    %v386 = vsel %vm385, %v355, %v384
    %vm387 = vcmask 1047559
    %v388 = vsel %vm387, %v374, %v386
    %vm389 = vcmask 261120
    %v390 = vsel %vm389, %v388, 0
    %392 = vmatprep.subr.mxu0 0.0
    %393 = vmatpush1.msra.mxu0 %v172
    %394 = vmatprep.subr.mxu0 0.0
    %395 = vmatpush1.msra.mxu0 %v173
    %396 = vmatprep.subr.mxu0 0.0
    %397 = vmatpush1.msra.mxu0 %v174
    %398 = vmatprep.subr.mxu0 0.0
    %399 = vmatpush1.msra.mxu0 %v175
    %400 = vmatprep.subr.mxu0 0.0
    %401 = vmatpush1.msra.mxu0 0.0
    %402 = vmatprep.subr.mxu0 0.0
    %403 = vmatpush1.msra.mxu0 0.0
    %404 = vmatprep.subr.mxu0 0.0
    %405 = vmatpush1.msra.mxu0 0.0
    %406 = vmatprep.subr.mxu0 0.0
    %407 = vmatpush1.msra.mxu0 0.0
    %408 = vmatprep.subr.mxu0 0.0
    %409 = vmatpush1.msra.mxu0 0.0
    %410 = vmatprep.subr.mxu0 0.0
    %411 = vmatpush1.msra.mxu0 0.0
    %412 = vmatprep.subr.mxu0 0.0
    %413 = vmatpush1.msra.mxu0 0.0
    %414 = vmatprep.subr.mxu0 0.0
    %415 = vmatpush1.msra.mxu0 0.0
    %416 = vmatprep.subr.mxu0 0.0
    %417 = vmatpush1.msra.mxu0 0.0
    %418 = vmatprep.subr.mxu0 0.0
    %419 = vmatpush1.msra.mxu0 0.0
    %420 = vmatprep.subr.mxu0 0.0
    %421 = vmatpush1.msra.mxu0 0.0
    %422 = vmatprep.subr.mxu0 0.0
    %423 = vmatpush1.msra.mxu0 0.0
    %424 = vmatprep.subr.mxu0 0.0
    %425 = vmatpush1.msra.mxu0 0.0
    %426 = vmatprep.subr.mxu0 0.0
    %427 = vmatpush1.msra.mxu0 0.0
    %428 = vmatprep.subr.mxu0 0.0
    %429 = vmatpush1.msra.mxu0 0.0
    %430 = vmatprep.subr.mxu0 0.0
    %431 = vmatpush1.msra.mxu0 0.0
    %432 = vmatprep.subr.mxu0 0.0
    %433 = vmatpush1.msra.mxu0 0.0
    %434 = vmatprep.subr.mxu0 0.0
    %435 = vmatpush1.msra.mxu0 0.0
    %436 = vmatprep.subr.mxu0 0.0
    %437 = vmatpush1.msra.mxu0 0.0
    %438 = vmatprep.subr.mxu0 0.0
    %439 = vmatpush1.msra.mxu0 0.0
    %440 = vmatprep.subr.mxu0 0.0
    %441 = vmatpush1.msra.mxu0 0.0
    %442 = vmatprep.subr.mxu0 0.0
    %443 = vmatpush1.msra.mxu0 0.0
    %444 = vmatprep.subr.mxu0 0.0
    %445 = vmatpush1.msra.mxu0 0.0
    %446 = vmatprep.subr.mxu0 0.0
    %447 = vmatpush1.msra.mxu0 0.0
    %448 = vmatprep.subr.mxu0 0.0
    %449 = vmatpush1.msra.mxu0 0.0
    %450 = vmatprep.subr.mxu0 0.0
    %451 = vmatpush1.msra.mxu0 0.0
    %452 = vmatprep.subr.mxu0 0.0
    %453 = vmatpush1.msra.mxu0 0.0
    %454 = vmatprep.subr.mxu0 0.0
    %455 = vmatpush1.msra.mxu0 0.0
    %456 = vmatprep.mubr.f32.mxu0 0.0
    %457 = vmatmul.mubr.f32.gmra.mrb[0].mxu0 %v390
    %v458 = vpop.f32.mrb[0].mxu0
    %v459 = vadd.f32 %v181, %v458
    %v460 = vpop.f32.mrb[0].mxu0
    %461 = vdwg.mxu0
    %462 = vst [vmem:[#allocation7] sm:$0xff] %v459
    // Predicated region
    $region22: #{tpu_custom_call.1} parent=1 // pred_check
      _
    $region23: #{tpu_custom_call.1} parent=1 // pred_check_branch
      %464 = sbr.rel (0) target = $region25
    $region24: #{tpu_custom_call.1} parent=1 // pred_region
      %s466 = ssub.s32 128, 128
      %467 = vsyncadd [#allocation4], %s466
      %s469 = sshll.u32 [#allocation7], 4
      %s470 = int_to_ptr.vmem [resolvable:$true] %s469
      %472 = dma.vmem_to_hbm [thread:$0]  %s470, 128, %s3, [#allocation4]
    $region25: #{tpu_custom_call.1} parent=1 // pred_fallthru
      _
    // Predicated region
    $region26: #{tpu_custom_call.1} parent=1 // pred_check
      _
    $region27: #{tpu_custom_call.1} parent=1 // pred_check_branch
      %474 = sbr.rel (0) target = $region29
    $region28: #{tpu_custom_call.1} parent=1 // pred_region
      %475 = dma.done [#allocation4], 128
    $region29: #{tpu_custom_call.1} parent=1 // pred_fallthru
      _
    %476 = vsyncpa [#allocation3], 1
    %477 = vsyncpa [#allocation6], 1
    %478 = vsyncpa [#allocation4], 1

</llo_original>
